<compile_context>
chip_gen: v7x
topology: tpu7x:2x2x1
jax: 0.10.0
libtpu: 0.0.40
codegen_flags: <defaults>
</compile_context>

<pallas_src>
import functools

import jax
import jax.numpy as jnp
from jax.experimental import pallas as pl
from jax.experimental.pallas import tpu as pltpu


def _round_up(x: int, m: int) -> int:
    return (x + m - 1) // m * m


def _mlp3_kernel(x_ref, w1_ref, b1_ref, w2_ref, b2_ref, w3_ref, b3_ref, o_ref):
    """Three fused Linear+tanh layers on one row-packed batch tile (all in VMEM)."""
    h = jnp.tanh(
        jnp.dot(x_ref[...], w1_ref[...], preferred_element_type=jnp.float32)
        + b1_ref[...]
    )
    h = jnp.tanh(
        jnp.dot(h, w2_ref[...], preferred_element_type=jnp.float32) + b2_ref[...]
    )
    h = jnp.tanh(
        jnp.dot(h, w3_ref[...], preferred_element_type=jnp.float32) + b3_ref[...]
    )
    o_ref[...] = h.astype(o_ref.dtype)


@functools.partial(
    jax.jit,
    static_argnames=("self_obs_dim", "all_neighbor_obs_size", "max_tile_rows"),
)
def quad_neighborhood_encoder_mlp(
    self_obs,              # unused by this encoder variant (API parity with PyTorch)
    obs,                   # (batch, self_obs_dim + all_neighbor_obs_size [+ extra])
    params,                # dict of W1,b1,W2,b2,W3,b3; W stored (in, out) i.e. y = x@W+b
    *,
    self_obs_dim: int,
    all_neighbor_obs_size: int,
    max_tile_rows: int = 512,   # slab rows / grid step (= 512*pack batch rows)
):
    del self_obs
    batch, obs_width = obs.shape
    hidden = params["W1"].shape[1]
    assert params["W1"].shape[0] == all_neighbor_obs_size

    # Lane-packing factor: pack `pack` batch rows into one 128-lane "super row".
    pack = 128 // hidden if (hidden <= 128 and 128 % hidden == 0) else 1

    # --- fold the column slice into W1 (zero rows for non-neighbor columns),
    #     then block-diagonalize all layers for the row-packed layout.
    f32 = jnp.float32
    w1_full = (
        jnp.zeros((obs_width, hidden), f32)
        .at[self_obs_dim : self_obs_dim + all_neighbor_obs_size, :]
        .set(params["W1"].astype(f32))
    )
    eye = jnp.eye(pack, dtype=f32)
    w1 = jnp.kron(eye, w1_full)                      # (pack*obs_width, pack*hidden)
    w2 = jnp.kron(eye, params["W2"].astype(f32))     # (pack*hidden,   pack*hidden)
    w3 = jnp.kron(eye, params["W3"].astype(f32))
    b1 = jnp.tile(params["b1"].astype(f32).reshape(1, hidden), (1, pack))
    b2 = jnp.tile(params["b2"].astype(f32).reshape(1, hidden), (1, pack))
    b3 = jnp.tile(params["b3"].astype(f32).reshape(1, hidden), (1, pack))

    # --- batch padding (only when batch is not a multiple of 8*pack) + row packing.
    #     The reshapes are contiguous views: no extra HBM pass.
    unit = 8 * pack
    padded_batch = _round_up(batch, unit)
    if padded_batch != batch:
        obs = jnp.pad(obs, ((0, padded_batch - batch), (0, 0)))
    rows = padded_batch // pack                       # multiple of 8
    x = obs.reshape(rows, pack * obs_width)

    tile_rows = min(max_tile_rows, rows)              # both multiples of 8
    grid = (pl.cdiv(rows, tile_rows),)                # ragged last block is masked

    in_dim = pack * obs_width
    out_dim = pack * hidden

    cost = pl.CostEstimate(
        flops=2 * batch * (all_neighbor_obs_size * hidden + 2 * hidden * hidden),
        transcendentals=3 * batch * hidden,
        bytes_accessed=(
            padded_batch * (obs_width + hidden) * 4
            + 4 * (w1.size + w2.size + w3.size + b1.size + b2.size + b3.size)
        ),
    )

    out_slab = pl.pallas_call(
        _mlp3_kernel,
        out_shape=jax.ShapeDtypeStruct((rows, out_dim), jnp.float32),
        grid_spec=pltpu.PrefetchScalarGridSpec(
            num_scalar_prefetch=0,
            grid=grid,
            in_specs=[
                pl.BlockSpec((tile_rows, in_dim), lambda i: (i, 0)),   # activations
                pl.BlockSpec((in_dim, out_dim), lambda i: (0, 0)),     # W1 (resident)
                pl.BlockSpec((1, out_dim), lambda i: (0, 0)),          # b1
                pl.BlockSpec((out_dim, out_dim), lambda i: (0, 0)),    # W2
                pl.BlockSpec((1, out_dim), lambda i: (0, 0)),          # b2
                pl.BlockSpec((out_dim, out_dim), lambda i: (0, 0)),    # W3
                pl.BlockSpec((1, out_dim), lambda i: (0, 0)),          # b3
            ],
            out_specs=pl.BlockSpec((tile_rows, out_dim), lambda i: (i, 0)),
        ),
        compiler_params=pltpu.CompilerParams(
            dimension_semantics=("parallel",),        # megacore sharding on v7x
            vmem_limit_bytes=32 * 1024 * 1024,        # safe for v7x's smaller VMEM
        ),
        cost_estimate=cost,
    )(x, w1, b1, w2, b2, w3, b3)

    # Un-pack the super rows and drop the batch padding (contiguous reshape + slice).
    return out_slab.reshape(padded_batch, hidden)[:batch]


def init_params(key, in_dim, hidden):
    """Deterministic synthetic parameters (nn.Linear-like uniform init)."""
    ks = jax.random.split(key, 6)

    def lin(kw, kb, fan_in, fan_out):
        bound = 1.0 / jnp.sqrt(fan_in)
        w = jax.random.uniform(kw, (fan_in, fan_out), jnp.float32, -bound, bound)
        b = jax.random.uniform(kb, (fan_out,), jnp.float32, -bound, bound)
        return w, b

    w1, b1 = lin(ks[0], ks[1], in_dim, hidden)
    w2, b2 = lin(ks[2], ks[3], hidden, hidden)
    w3, b3 = lin(ks[4], ks[5], hidden, hidden)
    return {"W1": w1, "b1": b1, "W2": w2, "b2": b2, "W3": w3, "b3": b3}


if __name__ == "__main__":
    # Small shapes consistent with the module's forward:
    #   self_obs_dim=6, neighbor_obs_dim=4, num_use_neighbor_obs=2 -> nbr size 8
    #   neighbor_hidden_size=32, batch=8
    self_obs_dim = 6
    neighbor_obs_dim = 4
    num_use_neighbor_obs = 2
    neighbor_hidden_size = 32
    batch_size = 8
    all_neighbor_obs_size = neighbor_obs_dim * num_use_neighbor_obs

    key = jax.random.PRNGKey(0)
    k_obs, k_self, k_par = jax.random.split(key, 3)

    obs = jax.random.normal(
        k_obs, (batch_size, self_obs_dim + all_neighbor_obs_size), jnp.float32
    )
    self_obs = jax.random.normal(k_self, (batch_size, self_obs_dim), jnp.float32)
    params = init_params(k_par, all_neighbor_obs_size, neighbor_hidden_size)

    out = quad_neighborhood_encoder_mlp(
        self_obs,
        obs,
        params,
        self_obs_dim=self_obs_dim,
        all_neighbor_obs_size=all_neighbor_obs_size,
    )
    jax.block_until_ready(out)

    # Pure-JAX reference for sanity.
    x = obs[:, self_obs_dim : self_obs_dim + all_neighbor_obs_size]
    h = jnp.tanh(x @ params["W1"] + params["b1"])
    h = jnp.tanh(h @ params["W2"] + params["b2"])
    ref = jnp.tanh(h @ params["W3"] + params["b3"])
    assert out.shape == (batch_size, neighbor_hidden_size)
    assert jnp.allclose(out, ref, atol=1e-5, rtol=1e-5), float(
        jnp.max(jnp.abs(out - ref))
    )

    print("KERNEL_OK")
</pallas_src>

<mosaic_0001>
module attributes {stable_mosaic.version = 11 : i64} {
  func.func @_mlp3_kernel(%arg0: i32, %arg1: memref<8x56xf32, #tpu.memory_space<vmem>>, %arg2: memref<56x128xf32, #tpu.memory_space<vmem>>, %arg3: memref<1x128xf32, #tpu.memory_space<vmem>>, %arg4: memref<128x128xf32, #tpu.memory_space<vmem>>, %arg5: memref<1x128xf32, #tpu.memory_space<vmem>>, %arg6: memref<128x128xf32, #tpu.memory_space<vmem>>, %arg7: memref<1x128xf32, #tpu.memory_space<vmem>>, %arg8: memref<8x128xf32, #tpu.memory_space<vmem>>) attributes {dimension_semantics = [#tpu.dimension_semantics<parallel>], iteration_bounds = array<i64: 1>, scalar_prefetch = 0 : i64, scratch_operands = 0 : i64, tpu.core_type = #tpu.core_type<tc>, window_params = [{transform_indices = @transform_0, window_bounds = array<i64: 8, 56>}, {pipeline_mode = #tpu.pipeline_mode<synchronous>, transform_indices = @transform_1, window_bounds = array<i64: 56, 128>}, {pipeline_mode = #tpu.pipeline_mode<synchronous>, transform_indices = @transform_2, window_bounds = array<i64: 1, 128>}, {pipeline_mode = #tpu.pipeline_mode<synchronous>, transform_indices = @transform_3, window_bounds = array<i64: 128, 128>}, {pipeline_mode = #tpu.pipeline_mode<synchronous>, transform_indices = @transform_4, window_bounds = array<i64: 1, 128>}, {pipeline_mode = #tpu.pipeline_mode<synchronous>, transform_indices = @transform_5, window_bounds = array<i64: 128, 128>}, {pipeline_mode = #tpu.pipeline_mode<synchronous>, transform_indices = @transform_6, window_bounds = array<i64: 1, 128>}, {transform_indices = @transform_7, window_bounds = array<i64: 8, 128>}]} {
    %c0 = arith.constant 0 : index
    %c0_0 = arith.constant 0 : index
    %0 = vector.load %arg1[%c0, %c0_0] : memref<8x56xf32, #tpu.memory_space<vmem>>, vector<8x56xf32>
    %c0_1 = arith.constant 0 : index
    %c0_2 = arith.constant 0 : index
    %1 = vector.load %arg2[%c0_1, %c0_2] : memref<56x128xf32, #tpu.memory_space<vmem>>, vector<56x128xf32>
    %cst = arith.constant dense<0.000000e+00> : vector<8x128xf32>
    %2 = tpu.matmul %0, %1, %cst {dimension_numbers = #tpu.dot_dimension_numbers<[1], [0], [0], [1], [0, 0, 1, 1], [], []>} : vector<8x56xf32>, vector<56x128xf32>, vector<8x128xf32> -> vector<8x128xf32>
    %c0_3 = arith.constant 0 : index
    %c0_4 = arith.constant 0 : index
    %3 = vector.load %arg3[%c0_3, %c0_4] : memref<1x128xf32, #tpu.memory_space<vmem>>, vector<1x128xf32>
    %4 = vector.broadcast %3 : vector<1x128xf32> to vector<8x128xf32>
    %5 = arith.addf %2, %4 : vector<8x128xf32>
    %6 = math.tanh %5 : vector<8x128xf32>
    %c0_5 = arith.constant 0 : index
    %c0_6 = arith.constant 0 : index
    %7 = vector.load %arg4[%c0_5, %c0_6] : memref<128x128xf32, #tpu.memory_space<vmem>>, vector<128x128xf32>
    %cst_7 = arith.constant dense<0.000000e+00> : vector<8x128xf32>
    %8 = tpu.matmul %6, %7, %cst_7 {dimension_numbers = #tpu.dot_dimension_numbers<[1], [0], [0], [1], [0, 0, 1, 1], [], []>} : vector<8x128xf32>, vector<128x128xf32>, vector<8x128xf32> -> vector<8x128xf32>
    %c0_8 = arith.constant 0 : index
    %c0_9 = arith.constant 0 : index
    %9 = vector.load %arg5[%c0_8, %c0_9] : memref<1x128xf32, #tpu.memory_space<vmem>>, vector<1x128xf32>
    %10 = vector.broadcast %9 : vector<1x128xf32> to vector<8x128xf32>
    %11 = arith.addf %8, %10 : vector<8x128xf32>
    %12 = math.tanh %11 : vector<8x128xf32>
    %c0_10 = arith.constant 0 : index
    %c0_11 = arith.constant 0 : index
    %13 = vector.load %arg6[%c0_10, %c0_11] : memref<128x128xf32, #tpu.memory_space<vmem>>, vector<128x128xf32>
    %cst_12 = arith.constant dense<0.000000e+00> : vector<8x128xf32>
    %14 = tpu.matmul %12, %13, %cst_12 {dimension_numbers = #tpu.dot_dimension_numbers<[1], [0], [0], [1], [0, 0, 1, 1], [], []>} : vector<8x128xf32>, vector<128x128xf32>, vector<8x128xf32> -> vector<8x128xf32>
    %c0_13 = arith.constant 0 : index
    %c0_14 = arith.constant 0 : index
    %15 = vector.load %arg7[%c0_13, %c0_14] : memref<1x128xf32, #tpu.memory_space<vmem>>, vector<1x128xf32>
    %16 = vector.broadcast %15 : vector<1x128xf32> to vector<8x128xf32>
    %17 = arith.addf %14, %16 : vector<8x128xf32>
    %18 = math.tanh %17 : vector<8x128xf32>
    %c0_15 = arith.constant 0 : index
    %c0_16 = arith.constant 0 : index
    %19 = vector.load %arg8[%c0_15, %c0_16] : memref<8x128xf32, #tpu.memory_space<vmem>>, vector<8x128xf32>
    tpu.vector_store %arg8[%c0_15, %c0_16], %18 {strides = array<i32>} : memref<8x128xf32, #tpu.memory_space<vmem>>, vector<8x128xf32>,
    return
  }
  func.func @transform_0(%arg0: i32) -> (i32, i32) {
    %c0_i32 = arith.constant 0 : i32
    %c0_i32_0 = arith.constant 0 : i32
    return %arg0, %c0_i32 : i32, i32
  }
  func.func @transform_1(%arg0: i32) -> (i32, i32) {
    %c0_i32 = arith.constant 0 : i32
    %c0_i32_0 = arith.constant 0 : i32
    %c0_i32_1 = arith.constant 0 : i32
    return %c0_i32, %c0_i32_0 : i32, i32
  }
  func.func @transform_2(%arg0: i32) -> (i32, i32) {
    %c0_i32 = arith.constant 0 : i32
    %c0_i32_0 = arith.constant 0 : i32
    %c0_i32_1 = arith.constant 0 : i32
    return %c0_i32, %c0_i32_0 : i32, i32
  }
  func.func @transform_3(%arg0: i32) -> (i32, i32) {
    %c0_i32 = arith.constant 0 : i32
    %c0_i32_0 = arith.constant 0 : i32
    %c0_i32_1 = arith.constant 0 : i32
    return %c0_i32, %c0_i32_0 : i32, i32
  }
  func.func @transform_4(%arg0: i32) -> (i32, i32) {
    %c0_i32 = arith.constant 0 : i32
    %c0_i32_0 = arith.constant 0 : i32
    %c0_i32_1 = arith.constant 0 : i32
    return %c0_i32, %c0_i32_0 : i32, i32
  }
  func.func @transform_5(%arg0: i32) -> (i32, i32) {
    %c0_i32 = arith.constant 0 : i32
    %c0_i32_0 = arith.constant 0 : i32
    %c0_i32_1 = arith.constant 0 : i32
    return %c0_i32, %c0_i32_0 : i32, i32
  }
  func.func @transform_6(%arg0: i32) -> (i32, i32) {
    %c0_i32 = arith.constant 0 : i32
    %c0_i32_0 = arith.constant 0 : i32
    %c0_i32_1 = arith.constant 0 : i32
    return %c0_i32, %c0_i32_0 : i32, i32
  }
  func.func @transform_7(%arg0: i32) -> (i32, i32) {
    %c0_i32 = arith.constant 0 : i32
    %c0_i32_0 = arith.constant 0 : i32
    return %arg0, %c0_i32 : i32, i32
  }
}

</mosaic_0001>

<llo_original>
// kernel: quad_neighborhood_encoder_mlp.1
$region0: #{quad_neighborhood_encoder_mlp.1}
  #allocation0 [shape = 'u32[]', space=smem, size = 0x4, offset = 0x4, fixed_abs, tag = 'smem constant byte address 0x4 - core index']
  #allocation1 [shape = 'u32[144,128]{1,0:T(1,128)}', space=vmem, size = 0x12000, scoped, tag = 'internal scratch']
  %s0 = inlined_call_operand.vmem [shape: f32[8,56], index: 0, kind: input, shape index: {}]
  %s1 = inlined_call_operand.vmem [shape: f32[56,128], index: 1, kind: input, shape index: {}]
  %s2 = inlined_call_operand.vmem [shape: f32[1,128], index: 2, kind: input, shape index: {}]
  %s3 = inlined_call_operand.vmem [shape: f32[128,128], index: 3, kind: input, shape index: {}]
  %s4 = inlined_call_operand.vmem [shape: f32[1,128], index: 4, kind: input, shape index: {}]
  %s5 = inlined_call_operand.vmem [shape: f32[128,128], index: 5, kind: input, shape index: {}]
  %s6 = inlined_call_operand.vmem [shape: f32[1,128], index: 6, kind: input, shape index: {}]
  %s7 = inlined_call_operand.vmem [shape: f32[8,128], index: 7, kind: output, shape index: {}]
  %s8 = sld [smem:[#allocation0]]
  $region38: #{quad_neighborhood_encoder_mlp.1} parent=0
    _
  %s10 = ssub.s32 1, %s8
  %s11 = scalar_select 0, %s10, %s8
  // Predicated region
  $region2: #{quad_neighborhood_encoder_mlp.1} parent=0 // pred_check
    _
  $region3: #{quad_neighborhood_encoder_mlp.1} parent=0 // pred_check_branch
    %13 = sbr.rel (0) target = $region5
  $region4: #{quad_neighborhood_encoder_mlp.1} parent=0 // pred_region
    _
  $region5: #{quad_neighborhood_encoder_mlp.1} parent=0 // pred_fallthru
    _
  // Predicated region
  $region6: #{quad_neighborhood_encoder_mlp.1} parent=0 // pred_check
    _
  $region7: #{quad_neighborhood_encoder_mlp.1} parent=0 // pred_check_branch
    %15 = sbr.rel (0) target = $region9
  $region8: #{quad_neighborhood_encoder_mlp.1} parent=0 // pred_region
    _
  $region9: #{quad_neighborhood_encoder_mlp.1} parent=0 // pred_fallthru
    _
  // Predicated region
  $region10: #{quad_neighborhood_encoder_mlp.1} parent=0 // pred_check
    _
  $region11: #{quad_neighborhood_encoder_mlp.1} parent=0 // pred_check_branch
    %17 = sbr.rel (0) target = $region13
  $region12: #{quad_neighborhood_encoder_mlp.1} parent=0 // pred_region
    _
  $region13: #{quad_neighborhood_encoder_mlp.1} parent=0 // pred_fallthru
    _
  // Predicated region
  $region14: #{quad_neighborhood_encoder_mlp.1} parent=0 // pred_check
    _
  $region15: #{quad_neighborhood_encoder_mlp.1} parent=0 // pred_check_branch
    %19 = sbr.rel (0) target = $region17
  $region16: #{quad_neighborhood_encoder_mlp.1} parent=0 // pred_region
    _
  $region17: #{quad_neighborhood_encoder_mlp.1} parent=0 // pred_fallthru
    _
  // Predicated region
  $region18: #{quad_neighborhood_encoder_mlp.1} parent=0 // pred_check
    _
  $region19: #{quad_neighborhood_encoder_mlp.1} parent=0 // pred_check_branch
    %21 = sbr.rel (0) target = $region21
  $region20: #{quad_neighborhood_encoder_mlp.1} parent=0 // pred_region
    _
  $region21: #{quad_neighborhood_encoder_mlp.1} parent=0 // pred_fallthru
    _
  // Predicated region
  $region22: #{quad_neighborhood_encoder_mlp.1} parent=0 // pred_check
    _
  $region23: #{quad_neighborhood_encoder_mlp.1} parent=0 // pred_check_branch
    %23 = sbr.rel (0) target = $region25
  $region24: #{quad_neighborhood_encoder_mlp.1} parent=0 // pred_region
    _
  $region25: #{quad_neighborhood_encoder_mlp.1} parent=0 // pred_fallthru
    _
  // Predicated region
  $region26: #{quad_neighborhood_encoder_mlp.1} parent=0 // pred_check
    _
  $region27: #{quad_neighborhood_encoder_mlp.1} parent=0 // pred_check_branch
    %25 = sbr.rel (0) target = $region29
  $region28: #{quad_neighborhood_encoder_mlp.1} parent=0 // pred_region
    _
  $region29: #{quad_neighborhood_encoder_mlp.1} parent=0 // pred_fallthru
    _
  %v26 = vld [vmem:[%s0] sm:$0xff]
  %v27 = vld [vmem:[%s1] sm:$0xff]
  %v28 = vld [vmem:[%s1 + $0x8] sm:$0xff]
  %v29 = vld [vmem:[%s1 + $0x10] sm:$0xff]
  %v30 = vld [vmem:[%s1 + $0x18] sm:$0xff]
  %v31 = vld [vmem:[%s1 + $0x20] sm:$0xff]
  %v32 = vld [vmem:[%s1 + $0x28] sm:$0xff]
  %v33 = vld [vmem:[%s1 + $0x30] sm:$0xff]
  %v34 = vld [vmem:[%s2] sm:$0x1]
  %v36 = vlaneseq
  %v37 = vshrl.u32 %v36, 7
  %v38 = vsub.s32 0, %v37
  %v39 = vrot.slane %v34, %v38
  %vm41 = vcmask 457728
  %v43 = vsel %vm41, %v26, 0
  %45 = vmatprep.subr.mxu0 0.0
  %46 = vmatpush1.msra.mxu0 %v27
  %47 = vmatprep.subr.mxu0 0.0
  %48 = vmatpush1.msra.mxu0 %v28
  %49 = vmatprep.subr.mxu0 0.0
  %50 = vmatpush1.msra.mxu0 %v29
  %51 = vmatprep.subr.mxu0 0.0
  %52 = vmatpush1.msra.mxu0 %v30
  %53 = vmatprep.subr.mxu0 0.0
  %54 = vmatpush1.msra.mxu0 %v31
  %55 = vmatprep.subr.mxu0 0.0
  %56 = vmatpush1.msra.mxu0 %v32
  %57 = vmatprep.subr.mxu0 0.0
  %58 = vmatpush1.msra.mxu0 %v33
  %59 = vmatprep.subr.mxu0 0.0
  %60 = vmatpush1.msra.mxu0 0.0
  %61 = vmatprep.subr.mxu0 0.0
  %62 = vmatpush1.msra.mxu0 0.0
  %63 = vmatprep.subr.mxu0 0.0
  %64 = vmatpush1.msra.mxu0 0.0
  %65 = vmatprep.subr.mxu0 0.0
  %66 = vmatpush1.msra.mxu0 0.0
  %67 = vmatprep.subr.mxu0 0.0
  %68 = vmatpush1.msra.mxu0 0.0
  %69 = vmatprep.subr.mxu0 0.0
  %70 = vmatpush1.msra.mxu0 0.0
  %71 = vmatprep.subr.mxu0 0.0
  %72 = vmatpush1.msra.mxu0 0.0
  %73 = vmatprep.subr.mxu0 0.0
  %74 = vmatpush1.msra.mxu0 0.0
  %75 = vmatprep.subr.mxu0 0.0
  %76 = vmatpush1.msra.mxu0 0.0
  %77 = vmatprep.subr.mxu0 0.0
  %78 = vmatpush1.msra.mxu0 0.0
  %79 = vmatprep.subr.mxu0 0.0
  %80 = vmatpush1.msra.mxu0 0.0
  %81 = vmatprep.subr.mxu0 0.0
  %82 = vmatpush1.msra.mxu0 0.0
  %83 = vmatprep.subr.mxu0 0.0
  %84 = vmatpush1.msra.mxu0 0.0
  %85 = vmatprep.subr.mxu0 0.0
  %86 = vmatpush1.msra.mxu0 0.0
  %87 = vmatprep.subr.mxu0 0.0
  %88 = vmatpush1.msra.mxu0 0.0
  %89 = vmatprep.subr.mxu0 0.0
  %90 = vmatpush1.msra.mxu0 0.0
  %91 = vmatprep.subr.mxu0 0.0
  %92 = vmatpush1.msra.mxu0 0.0
  %93 = vmatprep.subr.mxu0 0.0
  %94 = vmatpush1.msra.mxu0 0.0
  %95 = vmatprep.subr.mxu0 0.0
  %96 = vmatpush1.msra.mxu0 0.0
  %97 = vmatprep.subr.mxu0 0.0
  %98 = vmatpush1.msra.mxu0 0.0
  %99 = vmatprep.subr.mxu0 0.0
  %100 = vmatpush1.msra.mxu0 0.0
  %101 = vmatprep.subr.mxu0 0.0
  %102 = vmatpush1.msra.mxu0 0.0
  %103 = vmatprep.subr.mxu0 0.0
  %104 = vmatpush1.msra.mxu0 0.0
  %105 = vmatprep.subr.mxu0 0.0
  %106 = vmatpush1.msra.mxu0 0.0
  %107 = vmatprep.subr.mxu0 0.0
  %108 = vmatpush1.msra.mxu0 0.0
  %109 = vmatprep.mubr.f32.mxu0 0.0
  %110 = vmatmul.mubr.f32.gmra.mrb[0].mxu0 %v43
  %v111 = vpop.f32.mrb[0].mxu0
  %v112 = vadd.f32 %v39, %v111
  %v113 = vpop.f32.mrb[0].mxu0
  %114 = vdwg.mxu0
  %v115 = vtanh.pop %v112
  %v116 = vld [vmem:[%s3] sm:$0xff]
  %v117 = vld [vmem:[%s3 + $0x8] sm:$0xff]
  %v118 = vld [vmem:[%s3 + $0x10] sm:$0xff]
  %v119 = vld [vmem:[%s3 + $0x18] sm:$0xff]
  %v120 = vld [vmem:[%s3 + $0x20] sm:$0xff]
  %v121 = vld [vmem:[%s3 + $0x28] sm:$0xff]
  %v122 = vld [vmem:[%s3 + $0x30] sm:$0xff]
  %v123 = vld [vmem:[%s3 + $0x38] sm:$0xff]
  %v124 = vld [vmem:[%s3 + $0x40] sm:$0xff]
  %v125 = vld [vmem:[%s3 + $0x48] sm:$0xff]
  %v126 = vld [vmem:[%s3 + $0x50] sm:$0xff]
  %v127 = vld [vmem:[%s3 + $0x58] sm:$0xff]
  %v128 = vld [vmem:[%s3 + $0x60] sm:$0xff]
  %v129 = vld [vmem:[%s3 + $0x68] sm:$0xff]
  %v130 = vld [vmem:[%s3 + $0x70] sm:$0xff]
  %v131 = vld [vmem:[%s3 + $0x78] sm:$0xff]
  %v132 = vld [vmem:[%s4] sm:$0x1]
  %v134 = vlaneseq
  %v135 = vshrl.u32 %v134, 7
  %v136 = vsub.s32 0, %v135
  %v137 = vrot.slane %v132, %v136
  %139 = vmatprep.subr.mxu0 0.0
  %140 = vmatpush1.msra.mxu0 %v116
  %141 = vmatprep.subr.mxu0 0.0
  %142 = vmatpush1.msra.mxu0 %v117
  %143 = vmatprep.subr.mxu0 0.0
  %144 = vmatpush1.msra.mxu0 %v118
  %145 = vmatprep.subr.mxu0 0.0
  %146 = vmatpush1.msra.mxu0 %v119
  %147 = vmatprep.subr.mxu0 0.0
  %148 = vmatpush1.msra.mxu0 %v120
  %149 = vmatprep.subr.mxu0 0.0
  %150 = vmatpush1.msra.mxu0 %v121
  %151 = vmatprep.subr.mxu0 0.0
  %152 = vmatpush1.msra.mxu0 %v122
  %153 = vmatprep.subr.mxu0 0.0
  %154 = vmatpush1.msra.mxu0 %v123
  %155 = vmatprep.subr.mxu0 0.0
  %156 = vmatpush1.msra.mxu0 %v124
  %157 = vmatprep.subr.mxu0 0.0
  %158 = vmatpush1.msra.mxu0 %v125
  %159 = vmatprep.subr.mxu0 0.0
  %160 = vmatpush1.msra.mxu0 %v126
  %161 = vmatprep.subr.mxu0 0.0
  %162 = vmatpush1.msra.mxu0 %v127
  %163 = vmatprep.subr.mxu0 0.0
  %164 = vmatpush1.msra.mxu0 %v128
  %165 = vmatprep.subr.mxu0 0.0
  %166 = vmatpush1.msra.mxu0 %v129
  %167 = vmatprep.subr.mxu0 0.0
  %168 = vmatpush1.msra.mxu0 %v130
  %169 = vmatprep.subr.mxu0 0.0
  %170 = vmatpush1.msra.mxu0 %v131
  %171 = vmatprep.subr.mxu0 0.0
  %172 = vmatpush1.msra.mxu0 0.0
  %173 = vmatprep.subr.mxu0 0.0
  %174 = vmatpush1.msra.mxu0 0.0
  %175 = vmatprep.subr.mxu0 0.0
  %176 = vmatpush1.msra.mxu0 0.0
  %177 = vmatprep.subr.mxu0 0.0
  %178 = vmatpush1.msra.mxu0 0.0
  %179 = vmatprep.subr.mxu0 0.0
  %180 = vmatpush1.msra.mxu0 0.0
  %181 = vmatprep.subr.mxu0 0.0
  %182 = vmatpush1.msra.mxu0 0.0
  %183 = vmatprep.subr.mxu0 0.0
  %184 = vmatpush1.msra.mxu0 0.0
  %185 = vmatprep.subr.mxu0 0.0
  %186 = vmatpush1.msra.mxu0 0.0
  %187 = vmatprep.subr.mxu0 0.0
  %188 = vmatpush1.msra.mxu0 0.0
  %189 = vmatprep.subr.mxu0 0.0
  %190 = vmatpush1.msra.mxu0 0.0
  %191 = vmatprep.subr.mxu0 0.0
  %192 = vmatpush1.msra.mxu0 0.0
  %193 = vmatprep.subr.mxu0 0.0
  %194 = vmatpush1.msra.mxu0 0.0
  %195 = vmatprep.subr.mxu0 0.0
  %196 = vmatpush1.msra.mxu0 0.0
  %197 = vmatprep.subr.mxu0 0.0
  %198 = vmatpush1.msra.mxu0 0.0
  %199 = vmatprep.subr.mxu0 0.0
  %200 = vmatpush1.msra.mxu0 0.0
  %201 = vmatprep.subr.mxu0 0.0
  %202 = vmatpush1.msra.mxu0 0.0
  %203 = vmatprep.mubr.f32.mxu0 0.0
  %204 = vmatmul.mubr.f32.gmra.mrb[0].mxu0 %v115
  %v205 = vpop.f32.mrb[0].mxu0
  %v206 = vadd.f32 %v137, %v205
  %v207 = vpop.f32.mrb[0].mxu0
  %208 = vdwg.mxu0
  %v209 = vtanh.pop %v206
  %v210 = vld [vmem:[%s5] sm:$0xff]
  %v211 = vld [vmem:[%s5 + $0x8] sm:$0xff]
  %v212 = vld [vmem:[%s5 + $0x10] sm:$0xff]
  %v213 = vld [vmem:[%s5 + $0x18] sm:$0xff]
  %v214 = vld [vmem:[%s5 + $0x20] sm:$0xff]
  %v215 = vld [vmem:[%s5 + $0x28] sm:$0xff]
  %v216 = vld [vmem:[%s5 + $0x30] sm:$0xff]
  %v217 = vld [vmem:[%s5 + $0x38] sm:$0xff]
  %v218 = vld [vmem:[%s5 + $0x40] sm:$0xff]
  %v219 = vld [vmem:[%s5 + $0x48] sm:$0xff]
  %v220 = vld [vmem:[%s5 + $0x50] sm:$0xff]
  %v221 = vld [vmem:[%s5 + $0x58] sm:$0xff]
  %v222 = vld [vmem:[%s5 + $0x60] sm:$0xff]
  %v223 = vld [vmem:[%s5 + $0x68] sm:$0xff]
  %v224 = vld [vmem:[%s5 + $0x70] sm:$0xff]
  %v225 = vld [vmem:[%s5 + $0x78] sm:$0xff]
  %v226 = vld [vmem:[%s6] sm:$0x1]
  %v228 = vlaneseq
  %v229 = vshrl.u32 %v228, 7
  %v230 = vsub.s32 0, %v229
  %v231 = vrot.slane %v226, %v230
  %233 = vmatprep.subr.mxu0 0.0
  %234 = vmatpush1.msra.mxu0 %v210
  %235 = vmatprep.subr.mxu0 0.0
  %236 = vmatpush1.msra.mxu0 %v211
  %237 = vmatprep.subr.mxu0 0.0
  %238 = vmatpush1.msra.mxu0 %v212
  %239 = vmatprep.subr.mxu0 0.0
  %240 = vmatpush1.msra.mxu0 %v213
  %241 = vmatprep.subr.mxu0 0.0
  %242 = vmatpush1.msra.mxu0 %v214
  %243 = vmatprep.subr.mxu0 0.0
  %244 = vmatpush1.msra.mxu0 %v215
  %245 = vmatprep.subr.mxu0 0.0
  %246 = vmatpush1.msra.mxu0 %v216
  %247 = vmatprep.subr.mxu0 0.0
  %248 = vmatpush1.msra.mxu0 %v217
  %249 = vmatprep.subr.mxu0 0.0
  %250 = vmatpush1.msra.mxu0 %v218
  %251 = vmatprep.subr.mxu0 0.0
  %252 = vmatpush1.msra.mxu0 %v219
  %253 = vmatprep.subr.mxu0 0.0
  %254 = vmatpush1.msra.mxu0 %v220
  %255 = vmatprep.subr.mxu0 0.0
  %256 = vmatpush1.msra.mxu0 %v221
  %257 = vmatprep.subr.mxu0 0.0
  %258 = vmatpush1.msra.mxu0 %v222
  %259 = vmatprep.subr.mxu0 0.0
  %260 = vmatpush1.msra.mxu0 %v223
  %261 = vmatprep.subr.mxu0 0.0
  %262 = vmatpush1.msra.mxu0 %v224
  %263 = vmatprep.subr.mxu0 0.0
  %264 = vmatpush1.msra.mxu0 %v225
  %265 = vmatprep.subr.mxu0 0.0
  %266 = vmatpush1.msra.mxu0 0.0
  %267 = vmatprep.subr.mxu0 0.0
  %268 = vmatpush1.msra.mxu0 0.0
  %269 = vmatprep.subr.mxu0 0.0
  %270 = vmatpush1.msra.mxu0 0.0
  %271 = vmatprep.subr.mxu0 0.0
  %272 = vmatpush1.msra.mxu0 0.0
  %273 = vmatprep.subr.mxu0 0.0
  %274 = vmatpush1.msra.mxu0 0.0
  %275 = vmatprep.subr.mxu0 0.0
  %276 = vmatpush1.msra.mxu0 0.0
  %277 = vmatprep.subr.mxu0 0.0
  %278 = vmatpush1.msra.mxu0 0.0
  %279 = vmatprep.subr.mxu0 0.0
  %280 = vmatpush1.msra.mxu0 0.0
  %281 = vmatprep.subr.mxu0 0.0
  %282 = vmatpush1.msra.mxu0 0.0
  %283 = vmatprep.subr.mxu0 0.0
  %284 = vmatpush1.msra.mxu0 0.0
  %285 = vmatprep.subr.mxu0 0.0
  %286 = vmatpush1.msra.mxu0 0.0
  %287 = vmatprep.subr.mxu0 0.0
  %288 = vmatpush1.msra.mxu0 0.0
  %289 = vmatprep.subr.mxu0 0.0
  %290 = vmatpush1.msra.mxu0 0.0
  %291 = vmatprep.subr.mxu0 0.0
  %292 = vmatpush1.msra.mxu0 0.0
  %293 = vmatprep.subr.mxu0 0.0
  %294 = vmatpush1.msra.mxu0 0.0
  %295 = vmatprep.subr.mxu0 0.0
  %296 = vmatpush1.msra.mxu0 0.0
  %297 = vmatprep.mubr.f32.mxu0 0.0
  %298 = vmatmul.mubr.f32.gmra.mrb[0].mxu0 %v209
  %v299 = vpop.f32.mrb[0].mxu0
  %v300 = vadd.f32 %v231, %v299
  %v301 = vpop.f32.mrb[0].mxu0
  %302 = vdwg.mxu0
  %v303 = vtanh.pop %v300
  %304 = vst [vmem:[%s7] sm:$0xff] %v303
  // Predicated region
  $region30: #{quad_neighborhood_encoder_mlp.1} parent=0 // pred_check
    _
  $region31: #{quad_neighborhood_encoder_mlp.1} parent=0 // pred_check_branch
    %306 = sbr.rel (0) target = $region33
  $region32: #{quad_neighborhood_encoder_mlp.1} parent=0 // pred_region
    _
  $region33: #{quad_neighborhood_encoder_mlp.1} parent=0 // pred_fallthru
    _
  // Predicated region
  $region34: #{quad_neighborhood_encoder_mlp.1} parent=0 // pred_check
    _
  $region35: #{quad_neighborhood_encoder_mlp.1} parent=0 // pred_check_branch
    %308 = sbr.rel (0) target = $region37
  $region36: #{quad_neighborhood_encoder_mlp.1} parent=0 // pred_region
    _
  $region37: #{quad_neighborhood_encoder_mlp.1} parent=0 // pred_fallthru
    _

</llo_original>
